<compile_context>
chip_gen: v5e
topology: v5e:2x2
jax: 0.10.0
libtpu: 0.0.40
codegen_flags: <defaults>
</compile_context>

<pallas_src>
import functools

import jax
import jax.numpy as jnp
from jax.experimental import pallas as pl
from jax.experimental.pallas import tpu as pltpu

LANE = 128


def _round_up(x: int, m: int) -> int:
    return ((x + m - 1) // m) * m


def _make_mlp_kernel(num_layers: int):
    """Fused MLP kernel for `num_layers` Linear layers.

    Layer 0       : Linear only   (l1)
    Layers 1..L-2 : Linear + tanh (hidden)
    Layer  L-1    : Linear only   (output)
    """

    def kernel(x_ref, *refs):
        out_ref = refs[-1]
        wb_refs = refs[:-1]          # w0, b0, w1, b1, ...
        h = x_ref[...]               # bf16 activations (batch tile, in_p)
        for i in range(num_layers):
            w = wb_refs[2 * i][...]      # bf16 (in_p, out_p) — MXU operands
            b = wb_refs[2 * i + 1][...]  # f32  (1, out_p)
            acc = jnp.dot(h, w, preferred_element_type=jnp.float32) + b
            if 0 < i < num_layers - 1:   # tanh only on hidden layers (f32, EUP)
                acc = jnp.tanh(acc)
            if i < num_layers - 1:
                h = acc.astype(jnp.bfloat16)   # single cast per layer
            else:
                h = acc                        # final layer stays f32
        out_ref[...] = h.astype(out_ref.dtype)

    return kernel


@functools.partial(jax.jit, static_argnames=("tile_b",))
def torchnn_forward(x, params, tile_b=512):
    """x: (batch, n_inputs) f32; params: list of (w (in,out) f32, b (out,) f32)."""
    B, n_in = x.shape
    num_layers = len(params)
    dims = [n_in] + [w.shape[1] for w, _ in params]
    pdims = [_round_up(d, LANE) for d in dims]

    # Batch tiling: large tiles (512) when the batch allows; pad batch up.
    tb = min(tile_b, _round_up(B, 8))
    Bp = _round_up(B, tb)

    # Pad + cast activations (bf16 halves x DMA bytes; accumulation stays f32).
    xp = jnp.pad(x.astype(jnp.bfloat16), ((0, Bp - B), (0, pdims[0] - n_in)))

    # Pad + cast parameters (weights bf16 for the MXU, biases f32).
    flat = []
    for i, (w, b) in enumerate(params):
        wp = jnp.pad(w.astype(jnp.bfloat16),
                     ((0, pdims[i] - w.shape[0]), (0, pdims[i + 1] - w.shape[1])))
        bp = jnp.pad(b.astype(jnp.float32).reshape(1, -1),
                     ((0, 0), (0, pdims[i + 1] - w.shape[1])))
        flat += [wp, bp]

    kernel = _make_mlp_kernel(num_layers)

    grid = (Bp // tb,)
    in_specs = [pl.BlockSpec((tb, pdims[0]), lambda i: (i, 0))]
    for li in range(num_layers):
        in_specs.append(pl.BlockSpec((pdims[li], pdims[li + 1]), lambda i: (0, 0)))
        in_specs.append(pl.BlockSpec((1, pdims[li + 1]), lambda i: (0, 0)))
    out_specs = pl.BlockSpec((tb, pdims[-1]), lambda i: (i, 0))

    # Advisory cost estimate for XLA scheduling.
    flops = 2 * Bp * sum(pdims[i] * pdims[i + 1] for i in range(num_layers))
    transcendentals = Bp * sum(pdims[i + 1] for i in range(1, num_layers - 1))
    param_bytes = sum(a.size * a.dtype.itemsize for a in flat)
    bytes_accessed = xp.size * 2 + param_bytes + Bp * pdims[-1] * 4

    # Explicit scoped-VMEM budget: resident params + double-buffered x/out
    # tiles + activation headroom, with margin; capped well under v7x's 64 MiB.
    vmem_need = (2 * tb * pdims[0] * 2          # x tile, double-buffered, bf16
                 + 2 * tb * pdims[-1] * 4       # out tile, double-buffered, f32
                 + 2 * param_bytes              # resident weights/biases
                 + 4 * tb * max(pdims) * 4)     # intermediate activations
    vmem_limit = int(min(48 * 1024 * 1024, max(2 * vmem_need, 16 * 1024 * 1024)))

    out_p = pl.pallas_call(
        kernel,
        out_shape=jax.ShapeDtypeStruct((Bp, pdims[-1]), jnp.float32),
        grid=grid,
        in_specs=in_specs,
        out_specs=out_specs,
        compiler_params=pltpu.CompilerParams(
            dimension_semantics=("parallel",),   # v7x: shard batch over 2 TCs
            vmem_limit_bytes=vmem_limit),
        cost_estimate=pl.CostEstimate(
            flops=flops,
            transcendentals=transcendentals,
            bytes_accessed=bytes_accessed),
    )(xp, *flat)

    # Slice away batch + lane padding before returning to downstream consumers.
    return out_p[:B, :dims[-1]]


def init_params(key, n_inputs, hidden_units, n_outputs):
    """Deterministic init mirroring nn.Linear's U(-1/sqrt(fan_in), 1/sqrt(fan_in)).

    Weights are stored (in_features, out_features) so the kernel computes
    y = x @ W + b directly (PyTorch stores (out, in) and does x @ W.T).
    """
    dims = [n_inputs] + list(hidden_units) + [n_outputs]
    params = []
    for i in range(len(dims) - 1):
        fan_in, fan_out = dims[i], dims[i + 1]
        key, kw, kb = jax.random.split(key, 3)
        bound = 1.0 / float(fan_in) ** 0.5
        w = jax.random.uniform(kw, (fan_in, fan_out), jnp.float32, -bound, bound)
        b = jax.random.uniform(kb, (fan_out,), jnp.float32, -bound, bound)
        params.append((w, b))
    return params


def reference_forward(x, params):
    """Pure-JAX f32 reference matching the PyTorch forward semantics."""
    num_layers = len(params)
    h = x
    for i, (w, b) in enumerate(params):
        h = h @ w + b
        if 0 < i < num_layers - 1:
            h = jnp.tanh(h)
    return h


if __name__ == "__main__":
    # Feature dims stay small (as the module implies); batch is made large
    # enough (1024 rows, ~128 KB of input) to exercise the batch-tiled grid
    # and amortize the per-call fixed overhead, per the performance review.
    batch = 1024
    n_inputs = 32
    hidden_units = [64, 64]
    n_outputs = 16

    key = jax.random.PRNGKey(0)
    key, kx = jax.random.split(key)
    x = jax.random.normal(kx, (batch, n_inputs), jnp.float32)

    params = init_params(key, n_inputs, hidden_units, n_outputs)

    out = torchnn_forward(x, params)
    out = jax.block_until_ready(out)

    ref = reference_forward(x, params)
    assert out.shape == (batch, n_outputs)
    max_err = float(jnp.max(jnp.abs(out - ref)))
    # bf16 MXU operands with f32 accumulation -> small, bounded error vs f32 ref.
    assert jnp.allclose(out, ref, atol=5e-2, rtol=5e-2), f"mismatch: max abs err {max_err}"

    print("KERNEL_OK")
</pallas_src>

<mosaic_0001>
module attributes {stable_mosaic.version = 11 : i64} {
  func.func @kernel(%arg0: i32, %arg1: memref<512x128xbf16, #tpu.memory_space<vmem>>, %arg2: memref<128x128xbf16, #tpu.memory_space<vmem>>, %arg3: memref<1x128xf32, #tpu.memory_space<vmem>>, %arg4: memref<128x128xbf16, #tpu.memory_space<vmem>>, %arg5: memref<1x128xf32, #tpu.memory_space<vmem>>, %arg6: memref<128x128xbf16, #tpu.memory_space<vmem>>, %arg7: memref<1x128xf32, #tpu.memory_space<vmem>>, %arg8: memref<512x128xf32, #tpu.memory_space<vmem>>) attributes {dimension_semantics = [#tpu.dimension_semantics<parallel>], iteration_bounds = array<i64: 2>, scalar_prefetch = 0 : i64, scratch_operands = 0 : i64, tpu.core_type = #tpu.core_type<tc>, window_params = [{transform_indices = @transform_0, window_bounds = array<i64: 512, 128>}, {pipeline_mode = #tpu.pipeline_mode<synchronous>, transform_indices = @transform_1, window_bounds = array<i64: 128, 128>}, {pipeline_mode = #tpu.pipeline_mode<synchronous>, transform_indices = @transform_2, window_bounds = array<i64: 1, 128>}, {pipeline_mode = #tpu.pipeline_mode<synchronous>, transform_indices = @transform_3, window_bounds = array<i64: 128, 128>}, {pipeline_mode = #tpu.pipeline_mode<synchronous>, transform_indices = @transform_4, window_bounds = array<i64: 1, 128>}, {pipeline_mode = #tpu.pipeline_mode<synchronous>, transform_indices = @transform_5, window_bounds = array<i64: 128, 128>}, {pipeline_mode = #tpu.pipeline_mode<synchronous>, transform_indices = @transform_6, window_bounds = array<i64: 1, 128>}, {transform_indices = @transform_7, window_bounds = array<i64: 512, 128>}]} {
    %c0 = arith.constant 0 : index
    %c0_0 = arith.constant 0 : index
    %0 = vector.load %arg1[%c0, %c0_0] : memref<512x128xbf16, #tpu.memory_space<vmem>>, vector<512x128xbf16>
    %c0_1 = arith.constant 0 : index
    %c0_2 = arith.constant 0 : index
    %1 = vector.load %arg2[%c0_1, %c0_2] : memref<128x128xbf16, #tpu.memory_space<vmem>>, vector<128x128xbf16>
    %c0_3 = arith.constant 0 : index
    %c0_4 = arith.constant 0 : index
    %2 = vector.load %arg3[%c0_3, %c0_4] : memref<1x128xf32, #tpu.memory_space<vmem>>, vector<1x128xf32>
    %cst = arith.constant dense<0.000000e+00> : vector<512x128xf32>
    %3 = tpu.matmul %0, %1, %cst {dimension_numbers = #tpu.dot_dimension_numbers<[1], [0], [0], [1], [0, 0, 1, 1], [], []>} : vector<512x128xbf16>, vector<128x128xbf16>, vector<512x128xf32> -> vector<512x128xf32>
    %4 = vector.broadcast %2 : vector<1x128xf32> to vector<512x128xf32>
    %5 = arith.addf %3, %4 : vector<512x128xf32>
    %6 = arith.truncf %5 : vector<512x128xf32> to vector<512x128xbf16>
    %c0_5 = arith.constant 0 : index
    %c0_6 = arith.constant 0 : index
    %7 = vector.load %arg4[%c0_5, %c0_6] : memref<128x128xbf16, #tpu.memory_space<vmem>>, vector<128x128xbf16>
    %c0_7 = arith.constant 0 : index
    %c0_8 = arith.constant 0 : index
    %8 = vector.load %arg5[%c0_7, %c0_8] : memref<1x128xf32, #tpu.memory_space<vmem>>, vector<1x128xf32>
    %cst_9 = arith.constant dense<0.000000e+00> : vector<512x128xf32>
    %9 = tpu.matmul %6, %7, %cst_9 {dimension_numbers = #tpu.dot_dimension_numbers<[1], [0], [0], [1], [0, 0, 1, 1], [], []>} : vector<512x128xbf16>, vector<128x128xbf16>, vector<512x128xf32> -> vector<512x128xf32>
    %10 = vector.broadcast %8 : vector<1x128xf32> to vector<512x128xf32>
    %11 = arith.addf %9, %10 : vector<512x128xf32>
    %12 = math.tanh %11 : vector<512x128xf32>
    %13 = arith.truncf %12 : vector<512x128xf32> to vector<512x128xbf16>
    %c0_10 = arith.constant 0 : index
    %c0_11 = arith.constant 0 : index
    %14 = vector.load %arg6[%c0_10, %c0_11] : memref<128x128xbf16, #tpu.memory_space<vmem>>, vector<128x128xbf16>
    %c0_12 = arith.constant 0 : index
    %c0_13 = arith.constant 0 : index
    %15 = vector.load %arg7[%c0_12, %c0_13] : memref<1x128xf32, #tpu.memory_space<vmem>>, vector<1x128xf32>
    %cst_14 = arith.constant dense<0.000000e+00> : vector<512x128xf32>
    %16 = tpu.matmul %13, %14, %cst_14 {dimension_numbers = #tpu.dot_dimension_numbers<[1], [0], [0], [1], [0, 0, 1, 1], [], []>} : vector<512x128xbf16>, vector<128x128xbf16>, vector<512x128xf32> -> vector<512x128xf32>
    %17 = vector.broadcast %15 : vector<1x128xf32> to vector<512x128xf32>
    %18 = arith.addf %16, %17 : vector<512x128xf32>
    %c0_15 = arith.constant 0 : index
    %c0_16 = arith.constant 0 : index
    %19 = vector.load %arg8[%c0_15, %c0_16] : memref<512x128xf32, #tpu.memory_space<vmem>>, vector<512x128xf32>
    tpu.vector_store %arg8[%c0_15, %c0_16], %18 {strides = array<i32>} : memref<512x128xf32, #tpu.memory_space<vmem>>, vector<512x128xf32>,
    return
  }
  func.func @transform_0(%arg0: i32) -> (i32, i32) {
    %c0_i32 = arith.constant 0 : i32
    %c0_i32_0 = arith.constant 0 : i32
    return %arg0, %c0_i32 : i32, i32
  }
  func.func @transform_1(%arg0: i32) -> (i32, i32) {
    %c0_i32 = arith.constant 0 : i32
    %c0_i32_0 = arith.constant 0 : i32
    %c0_i32_1 = arith.constant 0 : i32
    return %c0_i32, %c0_i32_0 : i32, i32
  }
  func.func @transform_2(%arg0: i32) -> (i32, i32) {
    %c0_i32 = arith.constant 0 : i32
    %c0_i32_0 = arith.constant 0 : i32
    %c0_i32_1 = arith.constant 0 : i32
    return %c0_i32, %c0_i32_0 : i32, i32
  }
  func.func @transform_3(%arg0: i32) -> (i32, i32) {
    %c0_i32 = arith.constant 0 : i32
    %c0_i32_0 = arith.constant 0 : i32
    %c0_i32_1 = arith.constant 0 : i32
    return %c0_i32, %c0_i32_0 : i32, i32
  }
  func.func @transform_4(%arg0: i32) -> (i32, i32) {
    %c0_i32 = arith.constant 0 : i32
    %c0_i32_0 = arith.constant 0 : i32
    %c0_i32_1 = arith.constant 0 : i32
    return %c0_i32, %c0_i32_0 : i32, i32
  }
  func.func @transform_5(%arg0: i32) -> (i32, i32) {
    %c0_i32 = arith.constant 0 : i32
    %c0_i32_0 = arith.constant 0 : i32
    %c0_i32_1 = arith.constant 0 : i32
    return %c0_i32, %c0_i32_0 : i32, i32
  }
  func.func @transform_6(%arg0: i32) -> (i32, i32) {
    %c0_i32 = arith.constant 0 : i32
    %c0_i32_0 = arith.constant 0 : i32
    %c0_i32_1 = arith.constant 0 : i32
    return %c0_i32, %c0_i32_0 : i32, i32
  }
  func.func @transform_7(%arg0: i32) -> (i32, i32) {
    %c0_i32 = arith.constant 0 : i32
    %c0_i32_0 = arith.constant 0 : i32
    return %arg0, %c0_i32 : i32, i32
  }
}

</mosaic_0001>

<llo_original>
// kernel: torchnn_forward.1
$region0: #{torchnn_forward.1}
  #allocation0 [shape = 'u32[]', space=smem, size = 0x4, offset = 0x4, fixed_abs, tag = 'smem constant byte address 0x4 - core index']
  #allocation1 [shape = 'u32[72,128]{1,0:T(1,128)}', space=vmem, size = 0x9000, scoped, tag = 'internal scratch']
  %s0 = inlined_call_operand.vmem [shape: bf16[1024,128], index: 0, kind: input, shape index: {}]
  %s1 = inlined_call_operand.vmem [shape: bf16[128,128], index: 1, kind: input, shape index: {}]
  %s2 = inlined_call_operand.vmem [shape: f32[1,128], index: 2, kind: input, shape index: {}]
  %s3 = inlined_call_operand.vmem [shape: bf16[128,128], index: 3, kind: input, shape index: {}]
  %s4 = inlined_call_operand.vmem [shape: f32[1,128], index: 4, kind: input, shape index: {}]
  %s5 = inlined_call_operand.vmem [shape: bf16[128,128], index: 5, kind: input, shape index: {}]
  %s6 = inlined_call_operand.vmem [shape: f32[1,128], index: 6, kind: input, shape index: {}]
  %s7 = inlined_call_operand.vmem [shape: f32[1024,128], index: 7, kind: output, shape index: {}]
  %s8 = sld [smem:[#allocation0]]
  $region61: #{torchnn_forward.1} parent=0
    _
  %s10 = ssub.s32 1, %s8
  %s11 = scalar_select 0, %s10, %s8
  loop: start=0, step=1, limit=4
  $region2: #{torchnn_forward.1} parent=0 // loop_pre_header
    _
  $region3: #{torchnn_forward.1} parent=0 // loop_header
    %s13 = sphi 0, %s17
    %p14 = scmp.ge.s32.totalorder %s13, 4
    %s23 = sphi 0, %s25
    %s26 = sphi 0, %s23
    %s27 = sphi 0, %s26
    %s43 = sphi 0, %s27
    %s47 = sphi 0, %s47
    %s49 = sphi 0, %s47
    %s50 = sphi 0, %s49
    %s64 = sphi 0, %s50
    %s68 = sphi 0, %s68
    %s70 = sphi 0, %s68
    %s71 = sphi 0, %s70
    %s85 = sphi 0, %s71
    %s89 = sphi 0, %s89
    %s91 = sphi 0, %s89
    %s92 = sphi 0, %s91
    %s106 = sphi 0, %s92
    %s110 = sphi 0, %s110
    %s112 = sphi 0, %s110
    %s113 = sphi 0, %s112
    %s127 = sphi 0, %s113
    %s131 = sphi 0, %s131
    %s133 = sphi 0, %s131
    %s134 = sphi 0, %s133
    %s148 = sphi 0, %s134
    %s152 = sphi 0, %s152
    %s154 = sphi 0, %s152
    %s155 = sphi 0, %s154
    %s169 = sphi 0, %s155
    %s175 = sphi 0, %s177
    %s178 = sphi 0, %s175
    %s179 = sphi 0, %s178
    %s195 = sphi 0, %s179
  $region4: #{torchnn_forward.1} parent=0 // loop_header_branch
    %16 = sbr.rel (%p14) target = $region8
  $region5: #{torchnn_forward.1} parent=0 // loop_body
    %s18 = ssub.s32 %s13, 1
    %s19 = ssub.s32 %s13, 2
    %s20 = sadd.s32 %s13, 1
    %s21 = ssub.s32 %s13, %s20
    %p22 = scmp.eq.s32.totalorder %s21, 0
    %s24 = sadd.s32 %s23, 1
    %s25 = scalar_select %p22, %s23, %s24
    %p28 = pneg %p22
    %p29 = scmp.eq.s32.totalorder %s13, 1
    %p30 = por %p28, %p29
    %p31 = scmp.ne.s32.totalorder %s23, %s26
    %p32 = scmp.eq.s32.totalorder %s13, 0
    %p33 = por %p31, %p32
    %p34 = scmp.ne.s32.totalorder %s23, %s26
    %p35 = scmp.eq.s32.totalorder %s18, 1
    %p36 = por %p34, %p35
    %p37 = scmp.ne.s32.totalorder %s26, %s27
    %p38 = scmp.eq.s32.totalorder %s18, 0
    %p39 = por %p37, %p38
    %p40 = scmp.ne.s32.totalorder %s26, %s27
    %p41 = scmp.eq.s32.totalorder %s19, 1
    %p42 = por %p40, %p41
    %p44 = scmp.ne.s32.totalorder %s27, %s43
    %p45 = scmp.eq.s32.totalorder %s19, 0
    %p46 = por %p44, %p45
    %s48 = sadd.s32 %s47, 1
    %p51 = scmp.eq.s32.totalorder %s13, 1
    %p52 = scmp.ne.s32.totalorder %s47, %s49
    %p53 = scmp.eq.s32.totalorder %s13, 0
    %p54 = por %p52, %p53
    %p55 = scmp.ne.s32.totalorder %s47, %s49
    %p56 = scmp.eq.s32.totalorder %s18, 1
    %p57 = por %p55, %p56
    %p58 = scmp.ne.s32.totalorder %s49, %s50
    %p59 = scmp.eq.s32.totalorder %s18, 0
    %p60 = por %p58, %p59
    %p61 = scmp.ne.s32.totalorder %s49, %s50
    %p62 = scmp.eq.s32.totalorder %s19, 1
    %p63 = por %p61, %p62
    %p65 = scmp.ne.s32.totalorder %s50, %s64
    %p66 = scmp.eq.s32.totalorder %s19, 0
    %p67 = por %p65, %p66
    %s69 = sadd.s32 %s68, 1
    %p72 = scmp.eq.s32.totalorder %s13, 1
    %p73 = scmp.ne.s32.totalorder %s68, %s70
    %p74 = scmp.eq.s32.totalorder %s13, 0
    %p75 = por %p73, %p74
    %p76 = scmp.ne.s32.totalorder %s68, %s70
    %p77 = scmp.eq.s32.totalorder %s18, 1
    %p78 = por %p76, %p77
    %p79 = scmp.ne.s32.totalorder %s70, %s71
    %p80 = scmp.eq.s32.totalorder %s18, 0
    %p81 = por %p79, %p80
    %p82 = scmp.ne.s32.totalorder %s70, %s71
    %p83 = scmp.eq.s32.totalorder %s19, 1
    %p84 = por %p82, %p83
    %p86 = scmp.ne.s32.totalorder %s71, %s85
    %p87 = scmp.eq.s32.totalorder %s19, 0
    %p88 = por %p86, %p87
    %s90 = sadd.s32 %s89, 1
    %p93 = scmp.eq.s32.totalorder %s13, 1
    %p94 = scmp.ne.s32.totalorder %s89, %s91
    %p95 = scmp.eq.s32.totalorder %s13, 0
    %p96 = por %p94, %p95
    %p97 = scmp.ne.s32.totalorder %s89, %s91
    %p98 = scmp.eq.s32.totalorder %s18, 1
    %p99 = por %p97, %p98
    %p100 = scmp.ne.s32.totalorder %s91, %s92
    %p101 = scmp.eq.s32.totalorder %s18, 0
    %p102 = por %p100, %p101
    %p103 = scmp.ne.s32.totalorder %s91, %s92
    %p104 = scmp.eq.s32.totalorder %s19, 1
    %p105 = por %p103, %p104
    %p107 = scmp.ne.s32.totalorder %s92, %s106
    %p108 = scmp.eq.s32.totalorder %s19, 0
    %p109 = por %p107, %p108
    %s111 = sadd.s32 %s110, 1
    %p114 = scmp.eq.s32.totalorder %s13, 1
    %p115 = scmp.ne.s32.totalorder %s110, %s112
    %p116 = scmp.eq.s32.totalorder %s13, 0
    %p117 = por %p115, %p116
    %p118 = scmp.ne.s32.totalorder %s110, %s112
    %p119 = scmp.eq.s32.totalorder %s18, 1
    %p120 = por %p118, %p119
    %p121 = scmp.ne.s32.totalorder %s112, %s113
    %p122 = scmp.eq.s32.totalorder %s18, 0
    %p123 = por %p121, %p122
    %p124 = scmp.ne.s32.totalorder %s112, %s113
    %p125 = scmp.eq.s32.totalorder %s19, 1
    %p126 = por %p124, %p125
    %p128 = scmp.ne.s32.totalorder %s113, %s127
    %p129 = scmp.eq.s32.totalorder %s19, 0
    %p130 = por %p128, %p129
    %s132 = sadd.s32 %s131, 1
    %p135 = scmp.eq.s32.totalorder %s13, 1
    %p136 = scmp.ne.s32.totalorder %s131, %s133
    %p137 = scmp.eq.s32.totalorder %s13, 0
    %p138 = por %p136, %p137
    %p139 = scmp.ne.s32.totalorder %s131, %s133
    %p140 = scmp.eq.s32.totalorder %s18, 1
    %p141 = por %p139, %p140
    %p142 = scmp.ne.s32.totalorder %s133, %s134
    %p143 = scmp.eq.s32.totalorder %s18, 0
    %p144 = por %p142, %p143
    %p145 = scmp.ne.s32.totalorder %s133, %s134
    %p146 = scmp.eq.s32.totalorder %s19, 1
    %p147 = por %p145, %p146
    %p149 = scmp.ne.s32.totalorder %s134, %s148
    %p150 = scmp.eq.s32.totalorder %s19, 0
    %p151 = por %p149, %p150
    %s153 = sadd.s32 %s152, 1
    %p156 = scmp.eq.s32.totalorder %s13, 1
    %p157 = scmp.ne.s32.totalorder %s152, %s154
    %p158 = scmp.eq.s32.totalorder %s13, 0
    %p159 = por %p157, %p158
    %p160 = scmp.ne.s32.totalorder %s152, %s154
    %p161 = scmp.eq.s32.totalorder %s18, 1
    %p162 = por %p160, %p161
    %p163 = scmp.ne.s32.totalorder %s154, %s155
    %p164 = scmp.eq.s32.totalorder %s18, 0
    %p165 = por %p163, %p164
    %p166 = scmp.ne.s32.totalorder %s154, %s155
    %p167 = scmp.eq.s32.totalorder %s19, 1
    %p168 = por %p166, %p167
    %p170 = scmp.ne.s32.totalorder %s155, %s169
    %p171 = scmp.eq.s32.totalorder %s19, 0
    %p172 = por %p170, %p171
    %s173 = ssub.s32 %s13, %s20
    %p174 = scmp.eq.s32.totalorder %s173, 0
    %s176 = sadd.s32 %s175, 1
    %s177 = scalar_select %p174, %s175, %s176
    %p180 = pneg %p174
    %p181 = scmp.eq.s32.totalorder %s13, 1
    %p182 = por %p180, %p181
    %p183 = scmp.ne.s32.totalorder %s175, %s178
    %p184 = scmp.eq.s32.totalorder %s13, 0
    %p185 = por %p183, %p184
    %p186 = scmp.ne.s32.totalorder %s175, %s178
    %p187 = scmp.eq.s32.totalorder %s18, 1
    %p188 = por %p186, %p187
    %p189 = scmp.ne.s32.totalorder %s178, %s179
    %p190 = scmp.eq.s32.totalorder %s18, 0
    %p191 = por %p189, %p190
    %p192 = scmp.ne.s32.totalorder %s178, %s179
    %p193 = scmp.eq.s32.totalorder %s19, 1
    %p194 = por %p192, %p193
    %p196 = scmp.ne.s32.totalorder %s179, %s195
    %p197 = scmp.eq.s32.totalorder %s19, 0
    %p198 = por %p196, %p197
    %p199 = scmp.le.s32.totalorder 1, %s13
    %p200 = scmp.lt.s32.totalorder %s13, 3
    %p201 = pnand %p199, %p200
    %p202 = pneg %p201
    // Predicated region
    $region9: #{torchnn_forward.1} parent=5 // pred_check
      _
    $region10: #{torchnn_forward.1} parent=5 // pred_check_branch
      %204 = sbr.rel (%p201) target = $region12
    $region11: #{torchnn_forward.1} parent=5 // pred_region
      %s205 = ssub.s32 %s13, 1
      // Predicated region
      $region13: #{torchnn_forward.1} parent=11 // pred_check
        %p206 = pneg %p60
      $region14: #{torchnn_forward.1} parent=11 // pred_check_branch
        %208 = sbr.rel (%p206) target = $region16
      $region15: #{torchnn_forward.1} parent=11 // pred_region
        _
      $region16: #{torchnn_forward.1} parent=11 // pred_fallthru
        _
      // Predicated region
      $region17: #{torchnn_forward.1} parent=11 // pred_check
        %p209 = pneg %p81
      $region18: #{torchnn_forward.1} parent=11 // pred_check_branch
        %211 = sbr.rel (%p209) target = $region20
      $region19: #{torchnn_forward.1} parent=11 // pred_region
        _
      $region20: #{torchnn_forward.1} parent=11 // pred_fallthru
        _
      // Predicated region
      $region21: #{torchnn_forward.1} parent=11 // pred_check
        %p212 = pneg %p102
      $region22: #{torchnn_forward.1} parent=11 // pred_check_branch
        %214 = sbr.rel (%p212) target = $region24
      $region23: #{torchnn_forward.1} parent=11 // pred_region
        _
      $region24: #{torchnn_forward.1} parent=11 // pred_fallthru
        _
      // Predicated region
      $region25: #{torchnn_forward.1} parent=11 // pred_check
        %p215 = pneg %p123
      $region26: #{torchnn_forward.1} parent=11 // pred_check_branch
        %217 = sbr.rel (%p215) target = $region28
      $region27: #{torchnn_forward.1} parent=11 // pred_region
        _
      $region28: #{torchnn_forward.1} parent=11 // pred_fallthru
        _
      // Predicated region
      $region29: #{torchnn_forward.1} parent=11 // pred_check
        %p218 = pneg %p144
      $region30: #{torchnn_forward.1} parent=11 // pred_check_branch
        %220 = sbr.rel (%p218) target = $region32
      $region31: #{torchnn_forward.1} parent=11 // pred_region
        _
      $region32: #{torchnn_forward.1} parent=11 // pred_fallthru
        _
      // Predicated region
      $region33: #{torchnn_forward.1} parent=11 // pred_check
        %p221 = pneg %p165
      $region34: #{torchnn_forward.1} parent=11 // pred_check_branch
        %223 = sbr.rel (%p221) target = $region36
      $region35: #{torchnn_forward.1} parent=11 // pred_region
        _
      $region36: #{torchnn_forward.1} parent=11 // pred_fallthru
        _
    $region12: #{torchnn_forward.1} parent=5 // pred_fallthru
      _
    %p224 = scmp.lt.s32.totalorder %s13, 2
    // Predicated region
    $region37: #{torchnn_forward.1} parent=5 // pred_check
      %p225 = pneg %p224
    $region38: #{torchnn_forward.1} parent=5 // pred_check_branch
      %227 = sbr.rel (%p225) target = $region40
    $region39: #{torchnn_forward.1} parent=5 // pred_region
      // Predicated region
      $region41: #{torchnn_forward.1} parent=39 // pred_check
        %p228 = pneg %p33
      $region42: #{torchnn_forward.1} parent=39 // pred_check_branch
        %230 = sbr.rel (%p228) target = $region44
      $region43: #{torchnn_forward.1} parent=39 // pred_region
        %s231 = smul.u32 64, %s13
        %p232 = scmp.lt.s32.totalorder %s231, 127
        %s233 = scalar_select %p232, %s231, 127
        %s234 = smul.addr %s233, 4
        %s235 = scalar_lea.vmem %s0, %s234
        %s236 = smul.u32 64, %s13
      $region44: #{torchnn_forward.1} parent=39 // pred_fallthru
        _
    $region40: #{torchnn_forward.1} parent=5 // pred_fallthru
      _
    %p237 = scmp.le.s32.totalorder 1, %s13
    %p238 = scmp.lt.s32.totalorder %s13, 3
    %p239 = pnand %p237, %p238
    %p240 = pneg %p239
    // Predicated region
    $region45: #{torchnn_forward.1} parent=5 // pred_check
      _
    $region46: #{torchnn_forward.1} parent=5 // pred_check_branch
      %242 = sbr.rel (%p239) target = $region48
    $region47: #{torchnn_forward.1} parent=5 // pred_region
      %s243 = ssub.s32 %s13, 1
      %s244 = smul.u32 64, %s18
      %p245 = scmp.lt.s32.totalorder %s244, 127
      %s246 = scalar_select %p245, %s244, 127
      %s247 = smul.addr %s246, 4
      %s248 = scalar_lea.vmem %s0, %s247
      %p249 = pneg %p39
      %p250 = pneg %p36
      %p251 = pneg %p60
      %p252 = pneg %p57
      %p253 = pneg %p81
      %p254 = pneg %p78
      %p255 = pneg %p102
      %p256 = pneg %p99
      %p257 = pneg %p123
      %p258 = pneg %p120
      %p259 = pneg %p144
      %p260 = pneg %p141
      %p261 = pneg %p165
      %p262 = pneg %p162
      %p263 = pneg %p191
      %p264 = pneg %p188
      %s265 = smul.u32 64, %s18
      %p266 = scmp.lt.s32.totalorder %s265, 127
      %s267 = scalar_select %p266, %s265, 127
      %s268 = smul.addr %s267, 8
      %s269 = scalar_lea.vmem %s7, %s268
      %s270 = smul.u32 64, %s18
      %p271 = scmp.lt.s32.totalorder %s270, 127
      %s272 = scalar_select %p271, %s270, 127
      %s273 = smul.addr %s272, 4
      %s274 = scalar_lea.vmem %s0, %s273
      %s275 = smul.u32 64, %s18
      %s276 = smul.u32 64, %s18
      %p277 = scmp.lt.s32.totalorder %s276, 127
      %s278 = scalar_select %p277, %s276, 127
      %s279 = smul.addr %s278, 8
      %s280 = scalar_lea.vmem %s7, %s279
      %s281 = smul.u32 64, %s18
      %v282 = vld [vmem:[%s274] sm:$0xf]
      %v283 = vld [vmem:[%s274 + $0x4] sm:$0xf]
      %v284 = vld [vmem:[%s274 + $0x8] sm:$0xf]
      %v285 = vld [vmem:[%s274 + $0xc] sm:$0xf]
      %v286 = vld [vmem:[%s274 + $0x10] sm:$0xf]
      %v287 = vld [vmem:[%s274 + $0x14] sm:$0xf]
      %v288 = vld [vmem:[%s274 + $0x18] sm:$0xf]
      %v289 = vld [vmem:[%s274 + $0x1c] sm:$0xf]
      %v290 = vld [vmem:[%s274 + $0x20] sm:$0xf]
      %v291 = vld [vmem:[%s274 + $0x24] sm:$0xf]
      %v292 = vld [vmem:[%s274 + $0x28] sm:$0xf]
      %v293 = vld [vmem:[%s274 + $0x2c] sm:$0xf]
      %v294 = vld [vmem:[%s274 + $0x30] sm:$0xf]
      %v295 = vld [vmem:[%s274 + $0x34] sm:$0xf]
      %v296 = vld [vmem:[%s274 + $0x38] sm:$0xf]
      %v297 = vld [vmem:[%s274 + $0x3c] sm:$0xf]
      %v298 = vld [vmem:[%s274 + $0x40] sm:$0xf]
      %v299 = vld [vmem:[%s274 + $0x44] sm:$0xf]
      %v300 = vld [vmem:[%s274 + $0x48] sm:$0xf]
      %v301 = vld [vmem:[%s274 + $0x4c] sm:$0xf]
      %v302 = vld [vmem:[%s274 + $0x50] sm:$0xf]
      %v303 = vld [vmem:[%s274 + $0x54] sm:$0xf]
      %v304 = vld [vmem:[%s274 + $0x58] sm:$0xf]
      %v305 = vld [vmem:[%s274 + $0x5c] sm:$0xf]
      %v306 = vld [vmem:[%s274 + $0x60] sm:$0xf]
      %v307 = vld [vmem:[%s274 + $0x64] sm:$0xf]
      %v308 = vld [vmem:[%s274 + $0x68] sm:$0xf]
      %v309 = vld [vmem:[%s274 + $0x6c] sm:$0xf]
      %v310 = vld [vmem:[%s274 + $0x70] sm:$0xf]
      %v311 = vld [vmem:[%s274 + $0x74] sm:$0xf]
      %v312 = vld [vmem:[%s274 + $0x78] sm:$0xf]
      %v313 = vld [vmem:[%s274 + $0x7c] sm:$0xf]
      %v314 = vld [vmem:[%s274 + $0x80] sm:$0xf]
      %v315 = vld [vmem:[%s274 + $0x84] sm:$0xf]
      %v316 = vld [vmem:[%s274 + $0x88] sm:$0xf]
      %v317 = vld [vmem:[%s274 + $0x8c] sm:$0xf]
      %v318 = vld [vmem:[%s274 + $0x90] sm:$0xf]
      %v319 = vld [vmem:[%s274 + $0x94] sm:$0xf]
      %v320 = vld [vmem:[%s274 + $0x98] sm:$0xf]
      %v321 = vld [vmem:[%s274 + $0x9c] sm:$0xf]
      %v322 = vld [vmem:[%s274 + $0xa0] sm:$0xf]
      %v323 = vld [vmem:[%s274 + $0xa4] sm:$0xf]
      %v324 = vld [vmem:[%s274 + $0xa8] sm:$0xf]
      %v325 = vld [vmem:[%s274 + $0xac] sm:$0xf]
      %v326 = vld [vmem:[%s274 + $0xb0] sm:$0xf]
      %v327 = vld [vmem:[%s274 + $0xb4] sm:$0xf]
      %v328 = vld [vmem:[%s274 + $0xb8] sm:$0xf]
      %v329 = vld [vmem:[%s274 + $0xbc] sm:$0xf]
      %v330 = vld [vmem:[%s274 + $0xc0] sm:$0xf]
      %v331 = vld [vmem:[%s274 + $0xc4] sm:$0xf]
      %v332 = vld [vmem:[%s274 + $0xc8] sm:$0xf]
      %v333 = vld [vmem:[%s274 + $0xcc] sm:$0xf]
      %v334 = vld [vmem:[%s274 + $0xd0] sm:$0xf]
      %v335 = vld [vmem:[%s274 + $0xd4] sm:$0xf]
      %v336 = vld [vmem:[%s274 + $0xd8] sm:$0xf]
      %v337 = vld [vmem:[%s274 + $0xdc] sm:$0xf]
      %v338 = vld [vmem:[%s274 + $0xe0] sm:$0xf]
      %v339 = vld [vmem:[%s274 + $0xe4] sm:$0xf]
      %v340 = vld [vmem:[%s274 + $0xe8] sm:$0xf]
      %v341 = vld [vmem:[%s274 + $0xec] sm:$0xf]
      %v342 = vld [vmem:[%s274 + $0xf0] sm:$0xf]
      %v343 = vld [vmem:[%s274 + $0xf4] sm:$0xf]
      %v344 = vld [vmem:[%s274 + $0xf8] sm:$0xf]
      %v345 = vld [vmem:[%s274 + $0xfc] sm:$0xf]
      %v346 = vld [vmem:[%s1] sm:$0xf]
      %v347 = vld [vmem:[%s1 + $0x4] sm:$0xf]
      %v348 = vld [vmem:[%s1 + $0x8] sm:$0xf]
      %v349 = vld [vmem:[%s1 + $0xc] sm:$0xf]
      %v350 = vld [vmem:[%s1 + $0x10] sm:$0xf]
      %v351 = vld [vmem:[%s1 + $0x14] sm:$0xf]
      %v352 = vld [vmem:[%s1 + $0x18] sm:$0xf]
      %v353 = vld [vmem:[%s1 + $0x1c] sm:$0xf]
      %v354 = vld [vmem:[%s1 + $0x20] sm:$0xf]
      %v355 = vld [vmem:[%s1 + $0x24] sm:$0xf]
      %v356 = vld [vmem:[%s1 + $0x28] sm:$0xf]
      %v357 = vld [vmem:[%s1 + $0x2c] sm:$0xf]
      %v358 = vld [vmem:[%s1 + $0x30] sm:$0xf]
      %v359 = vld [vmem:[%s1 + $0x34] sm:$0xf]
      %v360 = vld [vmem:[%s1 + $0x38] sm:$0xf]
      %v361 = vld [vmem:[%s1 + $0x3c] sm:$0xf]
      %v362 = vld [vmem:[%s2] sm:$0x1]
      %v364 = vperm.slane %v362, 0
      %v430 = vunpack.c.l.b16 %v282
      %v431 = vunpack.c.l.b16 %v283
      %v432 = vunpack.c.l.b16 %v284
      %v433 = vunpack.c.l.b16 %v285
      %v434 = vunpack.c.l.b16 %v286
      %v435 = vunpack.c.l.b16 %v287
      %v436 = vunpack.c.l.b16 %v288
      %v437 = vunpack.c.l.b16 %v289
      %v438 = vunpack.c.l.b16 %v290
      %v439 = vunpack.c.l.b16 %v291
      %v440 = vunpack.c.l.b16 %v292
      %v441 = vunpack.c.l.b16 %v293
      %v442 = vunpack.c.l.b16 %v294
      %v443 = vunpack.c.l.b16 %v295
      %v444 = vunpack.c.l.b16 %v296
      %v445 = vunpack.c.l.b16 %v297
      %v446 = vunpack.c.l.b16 %v298
      %v447 = vunpack.c.l.b16 %v299
      %v448 = vunpack.c.l.b16 %v300
      %v449 = vunpack.c.l.b16 %v301
      %v450 = vunpack.c.l.b16 %v302
      %v451 = vunpack.c.l.b16 %v303
      %v452 = vunpack.c.l.b16 %v304
      %v453 = vunpack.c.l.b16 %v305
      %v454 = vunpack.c.l.b16 %v306
      %v455 = vunpack.c.l.b16 %v307
      %v456 = vunpack.c.l.b16 %v308
      %v457 = vunpack.c.l.b16 %v309
      %v458 = vunpack.c.l.b16 %v310
      %v459 = vunpack.c.l.b16 %v311
      %v460 = vunpack.c.l.b16 %v312
      %v461 = vunpack.c.l.b16 %v313
      %v462 = vunpack.c.l.b16 %v314
      %v463 = vunpack.c.l.b16 %v315
      %v464 = vunpack.c.l.b16 %v316
      %v465 = vunpack.c.l.b16 %v317
      %v466 = vunpack.c.l.b16 %v318
      %v467 = vunpack.c.l.b16 %v319
      %v468 = vunpack.c.l.b16 %v320
      %v469 = vunpack.c.l.b16 %v321
      %v470 = vunpack.c.l.b16 %v322
      %v471 = vunpack.c.l.b16 %v323
      %v472 = vunpack.c.l.b16 %v324
      %v473 = vunpack.c.l.b16 %v325
      %v474 = vunpack.c.l.b16 %v326
      %v475 = vunpack.c.l.b16 %v327
      %v476 = vunpack.c.l.b16 %v328
      %v477 = vunpack.c.l.b16 %v329
      %v478 = vunpack.c.l.b16 %v330
      %v479 = vunpack.c.l.b16 %v331
      %v480 = vunpack.c.l.b16 %v332
      %v481 = vunpack.c.l.b16 %v333
      %v482 = vunpack.c.l.b16 %v334
      %v483 = vunpack.c.l.b16 %v335
      %v484 = vunpack.c.l.b16 %v336
      %v485 = vunpack.c.l.b16 %v337
      %v486 = vunpack.c.l.b16 %v338
      %v487 = vunpack.c.l.b16 %v339
      %v488 = vunpack.c.l.b16 %v340
      %v489 = vunpack.c.l.b16 %v341
      %v490 = vunpack.c.l.b16 %v342
      %v491 = vunpack.c.l.b16 %v343
      %v492 = vunpack.c.l.b16 %v344
      %v493 = vunpack.c.l.b16 %v345
      %v494 = vpack.c.b16 %v431, %v430
      %v495 = vpack.c.b16 %v433, %v432
      %v496 = vpack.c.b16 %v435, %v434
      %v497 = vpack.c.b16 %v437, %v436
      %v498 = vpack.c.b16 %v439, %v438
      %v499 = vpack.c.b16 %v441, %v440
      %v500 = vpack.c.b16 %v443, %v442
      %v501 = vpack.c.b16 %v445, %v444
      %v502 = vpack.c.b16 %v447, %v446
      %v503 = vpack.c.b16 %v449, %v448
      %v504 = vpack.c.b16 %v451, %v450
      %v505 = vpack.c.b16 %v453, %v452
      %v506 = vpack.c.b16 %v455, %v454
      %v507 = vpack.c.b16 %v457, %v456
      %v508 = vpack.c.b16 %v459, %v458
      %v509 = vpack.c.b16 %v461, %v460
      %v510 = vpack.c.b16 %v463, %v462
      %v511 = vpack.c.b16 %v465, %v464
      %v512 = vpack.c.b16 %v467, %v466
      %v513 = vpack.c.b16 %v469, %v468
      %v514 = vpack.c.b16 %v471, %v470
      %v515 = vpack.c.b16 %v473, %v472
      %v516 = vpack.c.b16 %v475, %v474
      %v517 = vpack.c.b16 %v477, %v476
      %v518 = vpack.c.b16 %v479, %v478
      %v519 = vpack.c.b16 %v481, %v480
      %v520 = vpack.c.b16 %v483, %v482
      %v521 = vpack.c.b16 %v485, %v484
      %v522 = vpack.c.b16 %v487, %v486
      %v523 = vpack.c.b16 %v489, %v488
      %v524 = vpack.c.b16 %v491, %v490
      %v525 = vpack.c.b16 %v493, %v492
      %v574 = vunpack.c.l.b16 %v346
      %v575 = vunpack.c.l.b16 %v347
      %v576 = vunpack.c.l.b16 %v348
      %v577 = vunpack.c.l.b16 %v349
      %v578 = vunpack.c.l.b16 %v350
      %v579 = vunpack.c.l.b16 %v351
      %v580 = vunpack.c.l.b16 %v352
      %v581 = vunpack.c.l.b16 %v353
      %v582 = vunpack.c.l.b16 %v354
      %v583 = vunpack.c.l.b16 %v355
      %v584 = vunpack.c.l.b16 %v356
      %v585 = vunpack.c.l.b16 %v357
      %v586 = vunpack.c.l.b16 %v358
      %v587 = vunpack.c.l.b16 %v359
      %v588 = vunpack.c.l.b16 %v360
      %v589 = vunpack.c.l.b16 %v361
      %v590 = vpack.c.b16 %v575, %v574
      %v591 = vpack.c.b16 %v577, %v576
      %v592 = vpack.c.b16 %v579, %v578
      %v593 = vpack.c.b16 %v581, %v580
      %v594 = vpack.c.b16 %v583, %v582
      %v595 = vpack.c.b16 %v585, %v584
      %v596 = vpack.c.b16 %v587, %v586
      %v597 = vpack.c.b16 %v589, %v588
      %606 = vmatpush.bf16.msra.mxu0 %v597
      %607 = vmatpush.bf16.msra.mxu0 %v596
      %608 = vmatpush.bf16.msra.mxu0 %v595
      %609 = vmatpush.bf16.msra.mxu0 %v594
      %610 = vmatpush.bf16.msra.mxu0 %v593
      %611 = vmatpush.bf16.msra.mxu0 %v592
      %612 = vmatpush.bf16.msra.mxu0 %v591
      %613 = vmatpush.bf16.msra.mxu0 %v590
      %614 = vmatmul.bf16.gmra.mxu0 %v494
      %v615 = vpop.f32.mrf.mxu0
      %v616 = vadd.f32 %v364, %v615
      %v617 = vpop.f32.mrf.mxu0
      %v618 = vadd.f32 %v364, %v617
      %619 = vmatmul.bf16.gmra.mxu0 %v495
      %v620 = vpop.f32.mrf.mxu0
      %v621 = vadd.f32 %v364, %v620
      %v622 = vpop.f32.mrf.mxu0
      %v623 = vadd.f32 %v364, %v622
      %624 = vmatmul.bf16.gmra.mxu0 %v496
      %v625 = vpop.f32.mrf.mxu0
      %v626 = vadd.f32 %v364, %v625
      %v627 = vpop.f32.mrf.mxu0
      %v628 = vadd.f32 %v364, %v627
      %629 = vmatmul.bf16.gmra.mxu0 %v497
      %v630 = vpop.f32.mrf.mxu0
      %v631 = vadd.f32 %v364, %v630
      %v632 = vpop.f32.mrf.mxu0
      %v633 = vadd.f32 %v364, %v632
      %634 = vmatmul.bf16.gmra.mxu0 %v498
      %v635 = vpop.f32.mrf.mxu0
      %v636 = vadd.f32 %v364, %v635
      %v637 = vpop.f32.mrf.mxu0
      %v638 = vadd.f32 %v364, %v637
      %639 = vmatmul.bf16.gmra.mxu0 %v499
      %v640 = vpop.f32.mrf.mxu0
      %v641 = vadd.f32 %v364, %v640
      %v642 = vpop.f32.mrf.mxu0
      %v643 = vadd.f32 %v364, %v642
      %644 = vmatmul.bf16.gmra.mxu0 %v500
      %v645 = vpop.f32.mrf.mxu0
      %v646 = vadd.f32 %v364, %v645
      %v647 = vpop.f32.mrf.mxu0
      %v648 = vadd.f32 %v364, %v647
      %649 = vmatmul.bf16.gmra.mxu0 %v501
      %v650 = vpop.f32.mrf.mxu0
      %v651 = vadd.f32 %v364, %v650
      %v652 = vpop.f32.mrf.mxu0
      %v653 = vadd.f32 %v364, %v652
      %654 = vmatmul.bf16.gmra.mxu0 %v502
      %v655 = vpop.f32.mrf.mxu0
      %v656 = vadd.f32 %v364, %v655
      %v657 = vpop.f32.mrf.mxu0
      %v658 = vadd.f32 %v364, %v657
      %659 = vmatmul.bf16.gmra.mxu0 %v503
      %v660 = vpop.f32.mrf.mxu0
      %v661 = vadd.f32 %v364, %v660
      %v662 = vpop.f32.mrf.mxu0
      %v663 = vadd.f32 %v364, %v662
      %664 = vmatmul.bf16.gmra.mxu0 %v504
      %v665 = vpop.f32.mrf.mxu0
      %v666 = vadd.f32 %v364, %v665
      %v667 = vpop.f32.mrf.mxu0
      %v668 = vadd.f32 %v364, %v667
      %669 = vmatmul.bf16.gmra.mxu0 %v505
      %v670 = vpop.f32.mrf.mxu0
      %v671 = vadd.f32 %v364, %v670
      %v672 = vpop.f32.mrf.mxu0
      %v673 = vadd.f32 %v364, %v672
      %674 = vmatmul.bf16.gmra.mxu0 %v506
      %v675 = vpop.f32.mrf.mxu0
      %v676 = vadd.f32 %v364, %v675
      %v677 = vpop.f32.mrf.mxu0
      %v678 = vadd.f32 %v364, %v677
      %679 = vmatmul.bf16.gmra.mxu0 %v507
      %v680 = vpop.f32.mrf.mxu0
      %v681 = vadd.f32 %v364, %v680
      %v682 = vpop.f32.mrf.mxu0
      %v683 = vadd.f32 %v364, %v682
      %684 = vmatmul.bf16.gmra.mxu0 %v508
      %v685 = vpop.f32.mrf.mxu0
      %v686 = vadd.f32 %v364, %v685
      %v687 = vpop.f32.mrf.mxu0
      %v688 = vadd.f32 %v364, %v687
      %689 = vmatmul.bf16.gmra.mxu0 %v509
      %v690 = vpop.f32.mrf.mxu0
      %v691 = vadd.f32 %v364, %v690
      %v692 = vpop.f32.mrf.mxu0
      %v693 = vadd.f32 %v364, %v692
      %694 = vmatmul.bf16.gmra.mxu0 %v510
      %v695 = vpop.f32.mrf.mxu0
      %v696 = vadd.f32 %v364, %v695
      %v697 = vpop.f32.mrf.mxu0
      %v698 = vadd.f32 %v364, %v697
      %699 = vmatmul.bf16.gmra.mxu0 %v511
      %v700 = vpop.f32.mrf.mxu0
      %v701 = vadd.f32 %v364, %v700
      %v702 = vpop.f32.mrf.mxu0
      %v703 = vadd.f32 %v364, %v702
      %704 = vmatmul.bf16.gmra.mxu0 %v512
      %v705 = vpop.f32.mrf.mxu0
      %v706 = vadd.f32 %v364, %v705
      %v707 = vpop.f32.mrf.mxu0
      %v708 = vadd.f32 %v364, %v707
      %709 = vmatmul.bf16.gmra.mxu0 %v513
      %v710 = vpop.f32.mrf.mxu0
      %v711 = vadd.f32 %v364, %v710
      %v712 = vpop.f32.mrf.mxu0
      %v713 = vadd.f32 %v364, %v712
      %714 = vmatmul.bf16.gmra.mxu0 %v514
      %v715 = vpop.f32.mrf.mxu0
      %v716 = vadd.f32 %v364, %v715
      %v717 = vpop.f32.mrf.mxu0
      %v718 = vadd.f32 %v364, %v717
      %719 = vmatmul.bf16.gmra.mxu0 %v515
      %v720 = vpop.f32.mrf.mxu0
      %v721 = vadd.f32 %v364, %v720
      %v722 = vpop.f32.mrf.mxu0
      %v723 = vadd.f32 %v364, %v722
      %724 = vmatmul.bf16.gmra.mxu0 %v516
      %v725 = vpop.f32.mrf.mxu0
      %v726 = vadd.f32 %v364, %v725
      %v727 = vpop.f32.mrf.mxu0
      %v728 = vadd.f32 %v364, %v727
      %729 = vmatmul.bf16.gmra.mxu0 %v517
      %v730 = vpop.f32.mrf.mxu0
      %v731 = vadd.f32 %v364, %v730
      %v732 = vpop.f32.mrf.mxu0
      %v733 = vadd.f32 %v364, %v732
      %734 = vmatmul.bf16.gmra.mxu0 %v518
      %v735 = vpop.f32.mrf.mxu0
      %v736 = vadd.f32 %v364, %v735
      %v737 = vpop.f32.mrf.mxu0
      %v738 = vadd.f32 %v364, %v737
      %739 = vmatmul.bf16.gmra.mxu0 %v519
      %v740 = vpop.f32.mrf.mxu0
      %v741 = vadd.f32 %v364, %v740
      %v742 = vpop.f32.mrf.mxu0
      %v743 = vadd.f32 %v364, %v742
      %744 = vmatmul.bf16.gmra.mxu0 %v520
      %v745 = vpop.f32.mrf.mxu0
      %v746 = vadd.f32 %v364, %v745
      %v747 = vpop.f32.mrf.mxu0
      %v748 = vadd.f32 %v364, %v747
      %749 = vmatmul.bf16.gmra.mxu0 %v521
      %v750 = vpop.f32.mrf.mxu0
      %v751 = vadd.f32 %v364, %v750
      %v752 = vpop.f32.mrf.mxu0
      %v753 = vadd.f32 %v364, %v752
      %754 = vmatmul.bf16.gmra.mxu0 %v522
      %v755 = vpop.f32.mrf.mxu0
      %v756 = vadd.f32 %v364, %v755
      %v757 = vpop.f32.mrf.mxu0
      %v758 = vadd.f32 %v364, %v757
      %759 = vmatmul.bf16.gmra.mxu0 %v523
      %v760 = vpop.f32.mrf.mxu0
      %v761 = vadd.f32 %v364, %v760
      %v762 = vpop.f32.mrf.mxu0
      %v763 = vadd.f32 %v364, %v762
      %764 = vmatmul.bf16.gmra.mxu0 %v524
      %v765 = vpop.f32.mrf.mxu0
      %v766 = vadd.f32 %v364, %v765
      %v767 = vpop.f32.mrf.mxu0
      %v768 = vadd.f32 %v364, %v767
      %769 = vmatmul.bf16.gmra.mxu0 %v525
      %v770 = vpop.f32.mrf.mxu0
      %v771 = vadd.f32 %v364, %v770
      %v772 = vpop.f32.mrf.mxu0
      %v773 = vadd.f32 %v364, %v772
      %774 = vdwg.mxu0
      %v775 = vpack.c.bf16 %v618, %v616
      %v776 = vpack.c.bf16 %v623, %v621
      %v777 = vpack.c.bf16 %v628, %v626
      %v778 = vpack.c.bf16 %v633, %v631
      %v779 = vpack.c.bf16 %v638, %v636
      %v780 = vpack.c.bf16 %v643, %v641
      %v781 = vpack.c.bf16 %v648, %v646
      %v782 = vpack.c.bf16 %v653, %v651
      %v783 = vpack.c.bf16 %v658, %v656
      %v784 = vpack.c.bf16 %v663, %v661
      %v785 = vpack.c.bf16 %v668, %v666
      %v786 = vpack.c.bf16 %v673, %v671
      %v787 = vpack.c.bf16 %v678, %v676
      %v788 = vpack.c.bf16 %v683, %v681
      %v789 = vpack.c.bf16 %v688, %v686
      %v790 = vpack.c.bf16 %v693, %v691
      %v791 = vpack.c.bf16 %v698, %v696
      %v792 = vpack.c.bf16 %v703, %v701
      %v793 = vpack.c.bf16 %v708, %v706
      %v794 = vpack.c.bf16 %v713, %v711
      %v795 = vpack.c.bf16 %v718, %v716
      %v796 = vpack.c.bf16 %v723, %v721
      %v797 = vpack.c.bf16 %v728, %v726
      %v798 = vpack.c.bf16 %v733, %v731
      %v799 = vpack.c.bf16 %v738, %v736
      %v800 = vpack.c.bf16 %v743, %v741
      %v801 = vpack.c.bf16 %v748, %v746
      %v802 = vpack.c.bf16 %v753, %v751
      %v803 = vpack.c.bf16 %v758, %v756
      %v804 = vpack.c.bf16 %v763, %v761
      %v805 = vpack.c.bf16 %v768, %v766
      %v806 = vpack.c.bf16 %v773, %v771
      %v807 = vld [vmem:[%s3] sm:$0xf]
      %v808 = vld [vmem:[%s3 + $0x4] sm:$0xf]
      %v809 = vld [vmem:[%s3 + $0x8] sm:$0xf]
      %v810 = vld [vmem:[%s3 + $0xc] sm:$0xf]
      %v811 = vld [vmem:[%s3 + $0x10] sm:$0xf]
      %v812 = vld [vmem:[%s3 + $0x14] sm:$0xf]
      %v813 = vld [vmem:[%s3 + $0x18] sm:$0xf]
      %v814 = vld [vmem:[%s3 + $0x1c] sm:$0xf]
      %v815 = vld [vmem:[%s3 + $0x20] sm:$0xf]
      %v816 = vld [vmem:[%s3 + $0x24] sm:$0xf]
      %v817 = vld [vmem:[%s3 + $0x28] sm:$0xf]
      %v818 = vld [vmem:[%s3 + $0x2c] sm:$0xf]
      %v819 = vld [vmem:[%s3 + $0x30] sm:$0xf]
      %v820 = vld [vmem:[%s3 + $0x34] sm:$0xf]
      %v821 = vld [vmem:[%s3 + $0x38] sm:$0xf]
      %v822 = vld [vmem:[%s3 + $0x3c] sm:$0xf]
      %v823 = vld [vmem:[%s4] sm:$0x1]
      %v825 = vperm.slane %v823, 0
      %v843 = vunpack.c.l.b16 %v807
      %v844 = vunpack.c.l.b16 %v808
      %v845 = vunpack.c.l.b16 %v809
      %v846 = vunpack.c.l.b16 %v810
      %v847 = vunpack.c.l.b16 %v811
      %v848 = vunpack.c.l.b16 %v812
      %v849 = vunpack.c.l.b16 %v813
      %v850 = vunpack.c.l.b16 %v814
      %v851 = vunpack.c.l.b16 %v815
      %v852 = vunpack.c.l.b16 %v816
      %v853 = vunpack.c.l.b16 %v817
      %v854 = vunpack.c.l.b16 %v818
      %v855 = vunpack.c.l.b16 %v819
      %v856 = vunpack.c.l.b16 %v820
      %v857 = vunpack.c.l.b16 %v821
      %v858 = vunpack.c.l.b16 %v822
      %v859 = vpack.c.b16 %v844, %v843
      %v860 = vpack.c.b16 %v846, %v845
      %v861 = vpack.c.b16 %v848, %v847
      %v862 = vpack.c.b16 %v850, %v849
      %v863 = vpack.c.b16 %v852, %v851
      %v864 = vpack.c.b16 %v854, %v853
      %v865 = vpack.c.b16 %v856, %v855
      %v866 = vpack.c.b16 %v858, %v857
      %875 = vmatpush.bf16.msra.mxu0 %v866
      %876 = vmatpush.bf16.msra.mxu0 %v865
      %877 = vmatpush.bf16.msra.mxu0 %v864
      %878 = vmatpush.bf16.msra.mxu0 %v863
      %879 = vmatpush.bf16.msra.mxu0 %v862
      %880 = vmatpush.bf16.msra.mxu0 %v861
      %881 = vmatpush.bf16.msra.mxu0 %v860
      %882 = vmatpush.bf16.msra.mxu0 %v859
      %883 = vmatmul.bf16.gmra.mxu0 %v775
      %v884 = vpop.f32.mrf.mxu0
      %v885 = vadd.f32 %v825, %v884
      %v886 = vpop.f32.mrf.mxu0
      %v887 = vadd.f32 %v825, %v886
      %888 = vmatmul.bf16.gmra.mxu0 %v776
      %v889 = vpop.f32.mrf.mxu0
      %v890 = vadd.f32 %v825, %v889
      %v891 = vpop.f32.mrf.mxu0
      %v892 = vadd.f32 %v825, %v891
      %893 = vmatmul.bf16.gmra.mxu0 %v777
      %v894 = vpop.f32.mrf.mxu0
      %v895 = vadd.f32 %v825, %v894
      %v896 = vpop.f32.mrf.mxu0
      %v897 = vadd.f32 %v825, %v896
      %898 = vmatmul.bf16.gmra.mxu0 %v778
      %v899 = vpop.f32.mrf.mxu0
      %v900 = vadd.f32 %v825, %v899
      %v901 = vpop.f32.mrf.mxu0
      %v902 = vadd.f32 %v825, %v901
      %903 = vmatmul.bf16.gmra.mxu0 %v779
      %v904 = vpop.f32.mrf.mxu0
      %v905 = vadd.f32 %v825, %v904
      %v906 = vpop.f32.mrf.mxu0
      %v907 = vadd.f32 %v825, %v906
      %908 = vmatmul.bf16.gmra.mxu0 %v780
      %v909 = vpop.f32.mrf.mxu0
      %v910 = vadd.f32 %v825, %v909
      %v911 = vpop.f32.mrf.mxu0
      %v912 = vadd.f32 %v825, %v911
      %913 = vmatmul.bf16.gmra.mxu0 %v781
      %v914 = vpop.f32.mrf.mxu0
      %v915 = vadd.f32 %v825, %v914
      %v916 = vpop.f32.mrf.mxu0
      %v917 = vadd.f32 %v825, %v916
      %918 = vmatmul.bf16.gmra.mxu0 %v782
      %v919 = vpop.f32.mrf.mxu0
      %v920 = vadd.f32 %v825, %v919
      %v921 = vpop.f32.mrf.mxu0
      %v922 = vadd.f32 %v825, %v921
      %923 = vmatmul.bf16.gmra.mxu0 %v783
      %v924 = vpop.f32.mrf.mxu0
      %v925 = vadd.f32 %v825, %v924
      %v926 = vpop.f32.mrf.mxu0
      %v927 = vadd.f32 %v825, %v926
      %928 = vmatmul.bf16.gmra.mxu0 %v784
      %v929 = vpop.f32.mrf.mxu0
      %v930 = vadd.f32 %v825, %v929
      %v931 = vpop.f32.mrf.mxu0
      %v932 = vadd.f32 %v825, %v931
      %933 = vmatmul.bf16.gmra.mxu0 %v785
      %v934 = vpop.f32.mrf.mxu0
      %v935 = vadd.f32 %v825, %v934
      %v936 = vpop.f32.mrf.mxu0
      %v937 = vadd.f32 %v825, %v936
      %938 = vmatmul.bf16.gmra.mxu0 %v786
      %v939 = vpop.f32.mrf.mxu0
      %v940 = vadd.f32 %v825, %v939
      %v941 = vpop.f32.mrf.mxu0
      %v942 = vadd.f32 %v825, %v941
      %943 = vmatmul.bf16.gmra.mxu0 %v787
      %v944 = vpop.f32.mrf.mxu0
      %v945 = vadd.f32 %v825, %v944
      %v946 = vpop.f32.mrf.mxu0
      %v947 = vadd.f32 %v825, %v946
      %948 = vmatmul.bf16.gmra.mxu0 %v788
      %v949 = vpop.f32.mrf.mxu0
      %v950 = vadd.f32 %v825, %v949
      %v951 = vpop.f32.mrf.mxu0
      %v952 = vadd.f32 %v825, %v951
      %953 = vmatmul.bf16.gmra.mxu0 %v789
      %v954 = vpop.f32.mrf.mxu0
      %v955 = vadd.f32 %v825, %v954
      %v956 = vpop.f32.mrf.mxu0
      %v957 = vadd.f32 %v825, %v956
      %958 = vmatmul.bf16.gmra.mxu0 %v790
      %v959 = vpop.f32.mrf.mxu0
      %v960 = vadd.f32 %v825, %v959
      %v961 = vpop.f32.mrf.mxu0
      %v962 = vadd.f32 %v825, %v961
      %963 = vmatmul.bf16.gmra.mxu0 %v791
      %v964 = vpop.f32.mrf.mxu0
      %v965 = vadd.f32 %v825, %v964
      %v966 = vpop.f32.mrf.mxu0
      %v967 = vadd.f32 %v825, %v966
      %968 = vmatmul.bf16.gmra.mxu0 %v792
      %v969 = vpop.f32.mrf.mxu0
      %v970 = vadd.f32 %v825, %v969
      %v971 = vpop.f32.mrf.mxu0
      %v972 = vadd.f32 %v825, %v971
      %973 = vmatmul.bf16.gmra.mxu0 %v793
      %v974 = vpop.f32.mrf.mxu0
      %v975 = vadd.f32 %v825, %v974
      %v976 = vpop.f32.mrf.mxu0
      %v977 = vadd.f32 %v825, %v976
      %978 = vmatmul.bf16.gmra.mxu0 %v794
      %v979 = vpop.f32.mrf.mxu0
      %v980 = vadd.f32 %v825, %v979
      %v981 = vpop.f32.mrf.mxu0
      %v982 = vadd.f32 %v825, %v981
      %983 = vmatmul.bf16.gmra.mxu0 %v795
      %v984 = vpop.f32.mrf.mxu0
      %v985 = vadd.f32 %v825, %v984
      %v986 = vpop.f32.mrf.mxu0
      %v987 = vadd.f32 %v825, %v986
      %988 = vmatmul.bf16.gmra.mxu0 %v796
      %v989 = vpop.f32.mrf.mxu0
      %v990 = vadd.f32 %v825, %v989
      %v991 = vpop.f32.mrf.mxu0
      %v992 = vadd.f32 %v825, %v991
      %993 = vmatmul.bf16.gmra.mxu0 %v797
      %v994 = vpop.f32.mrf.mxu0
      %v995 = vadd.f32 %v825, %v994
      %v996 = vpop.f32.mrf.mxu0
      %v997 = vadd.f32 %v825, %v996
      %998 = vmatmul.bf16.gmra.mxu0 %v798
      %v999 = vpop.f32.mrf.mxu0
      %v1000 = vadd.f32 %v825, %v999
      %v1001 = vpop.f32.mrf.mxu0
      %v1002 = vadd.f32 %v825, %v1001
      %1003 = vmatmul.bf16.gmra.mxu0 %v799
      %v1004 = vpop.f32.mrf.mxu0
      %v1005 = vadd.f32 %v825, %v1004
      %v1006 = vpop.f32.mrf.mxu0
      %v1007 = vadd.f32 %v825, %v1006
      %1008 = vmatmul.bf16.gmra.mxu0 %v800
      %v1009 = vpop.f32.mrf.mxu0
      %v1010 = vadd.f32 %v825, %v1009
      %v1011 = vpop.f32.mrf.mxu0
      %v1012 = vadd.f32 %v825, %v1011
      %1013 = vmatmul.bf16.gmra.mxu0 %v801
      %v1014 = vpop.f32.mrf.mxu0
      %v1015 = vadd.f32 %v825, %v1014
      %v1016 = vpop.f32.mrf.mxu0
      %v1017 = vadd.f32 %v825, %v1016
      %1018 = vmatmul.bf16.gmra.mxu0 %v802
      %v1019 = vpop.f32.mrf.mxu0
      %v1020 = vadd.f32 %v825, %v1019
      %v1021 = vpop.f32.mrf.mxu0
      %v1022 = vadd.f32 %v825, %v1021
      %1023 = vmatmul.bf16.gmra.mxu0 %v803
      %v1024 = vpop.f32.mrf.mxu0
      %v1025 = vadd.f32 %v825, %v1024
      %v1026 = vpop.f32.mrf.mxu0
      %v1027 = vadd.f32 %v825, %v1026
      %1028 = vmatmul.bf16.gmra.mxu0 %v804
      %v1029 = vpop.f32.mrf.mxu0
      %v1030 = vadd.f32 %v825, %v1029
      %v1031 = vpop.f32.mrf.mxu0
      %v1032 = vadd.f32 %v825, %v1031
      %1033 = vmatmul.bf16.gmra.mxu0 %v805
      %v1034 = vpop.f32.mrf.mxu0
      %v1035 = vadd.f32 %v825, %v1034
      %v1036 = vpop.f32.mrf.mxu0
      %v1037 = vadd.f32 %v825, %v1036
      %1038 = vmatmul.bf16.gmra.mxu0 %v806
      %v1039 = vpop.f32.mrf.mxu0
      %v1040 = vadd.f32 %v825, %v1039
      %v1041 = vpop.f32.mrf.mxu0
      %v1042 = vadd.f32 %v825, %v1041
      %1043 = vdwg.mxu0
      %v1044 = vtanh.pop %v885
      %v1045 = vtanh.pop %v887
      %v1046 = vtanh.pop %v890
      %v1047 = vtanh.pop %v892
      %v1048 = vtanh.pop %v895
      %v1049 = vtanh.pop %v897
      %v1050 = vtanh.pop %v900
      %v1051 = vtanh.pop %v902
      %v1052 = vtanh.pop %v905
      %v1053 = vtanh.pop %v907
      %v1054 = vtanh.pop %v910
      %v1055 = vtanh.pop %v912
      %v1056 = vtanh.pop %v915
      %v1057 = vtanh.pop %v917
      %v1058 = vtanh.pop %v920
      %v1059 = vtanh.pop %v922
      %v1060 = vtanh.pop %v925
      %v1061 = vtanh.pop %v927
      %v1062 = vtanh.pop %v930
      %v1063 = vtanh.pop %v932
      %v1064 = vtanh.pop %v935
      %v1065 = vtanh.pop %v937
      %v1066 = vtanh.pop %v940
      %v1067 = vtanh.pop %v942
      %v1068 = vtanh.pop %v945
      %v1069 = vtanh.pop %v947
      %v1070 = vtanh.pop %v950
      %v1071 = vtanh.pop %v952
      %v1072 = vtanh.pop %v955
      %v1073 = vtanh.pop %v957
      %v1074 = vtanh.pop %v960
      %v1075 = vtanh.pop %v962
      %v1076 = vtanh.pop %v965
      %v1077 = vtanh.pop %v967
      %v1078 = vtanh.pop %v970
      %v1079 = vtanh.pop %v972
      %v1080 = vtanh.pop %v975
      %v1081 = vtanh.pop %v977
      %v1082 = vtanh.pop %v980
      %v1083 = vtanh.pop %v982
      %v1084 = vtanh.pop %v985
      %v1085 = vtanh.pop %v987
      %v1086 = vtanh.pop %v990
      %v1087 = vtanh.pop %v992
      %v1088 = vtanh.pop %v995
      %v1089 = vtanh.pop %v997
      %v1090 = vtanh.pop %v1000
      %v1091 = vtanh.pop %v1002
      %v1092 = vtanh.pop %v1005
      %v1093 = vtanh.pop %v1007
      %v1094 = vtanh.pop %v1010
      %v1095 = vtanh.pop %v1012
      %v1096 = vtanh.pop %v1015
      %v1097 = vtanh.pop %v1017
      %v1098 = vtanh.pop %v1020
      %v1099 = vtanh.pop %v1022
      %v1100 = vtanh.pop %v1025
      %v1101 = vtanh.pop %v1027
      %v1102 = vtanh.pop %v1030
      %v1103 = vtanh.pop %v1032
      %v1104 = vtanh.pop %v1035
      %v1105 = vtanh.pop %v1037
      %v1106 = vtanh.pop %v1040
      %v1107 = vtanh.pop %v1042
      %v1108 = vpack.c.bf16 %v1045, %v1044
      %v1109 = vpack.c.bf16 %v1047, %v1046
      %v1110 = vpack.c.bf16 %v1049, %v1048
      %v1111 = vpack.c.bf16 %v1051, %v1050
      %v1112 = vpack.c.bf16 %v1053, %v1052
      %v1113 = vpack.c.bf16 %v1055, %v1054
      %v1114 = vpack.c.bf16 %v1057, %v1056
      %v1115 = vpack.c.bf16 %v1059, %v1058
      %v1116 = vpack.c.bf16 %v1061, %v1060
      %v1117 = vpack.c.bf16 %v1063, %v1062
      %v1118 = vpack.c.bf16 %v1065, %v1064
      %v1119 = vpack.c.bf16 %v1067, %v1066
      %v1120 = vpack.c.bf16 %v1069, %v1068
      %v1121 = vpack.c.bf16 %v1071, %v1070
      %v1122 = vpack.c.bf16 %v1073, %v1072
      %v1123 = vpack.c.bf16 %v1075, %v1074
      %v1124 = vpack.c.bf16 %v1077, %v1076
      %v1125 = vpack.c.bf16 %v1079, %v1078
      %v1126 = vpack.c.bf16 %v1081, %v1080
      %v1127 = vpack.c.bf16 %v1083, %v1082
      %v1128 = vpack.c.bf16 %v1085, %v1084
      %v1129 = vpack.c.bf16 %v1087, %v1086
      %v1130 = vpack.c.bf16 %v1089, %v1088
      %v1131 = vpack.c.bf16 %v1091, %v1090
      %v1132 = vpack.c.bf16 %v1093, %v1092
      %v1133 = vpack.c.bf16 %v1095, %v1094
      %v1134 = vpack.c.bf16 %v1097, %v1096
      %v1135 = vpack.c.bf16 %v1099, %v1098
      %v1136 = vpack.c.bf16 %v1101, %v1100
      %v1137 = vpack.c.bf16 %v1103, %v1102
      %v1138 = vpack.c.bf16 %v1105, %v1104
      %v1139 = vpack.c.bf16 %v1107, %v1106
      %v1140 = vld [vmem:[%s5] sm:$0xf]
      %v1141 = vld [vmem:[%s5 + $0x4] sm:$0xf]
      %v1142 = vld [vmem:[%s5 + $0x8] sm:$0xf]
      %v1143 = vld [vmem:[%s5 + $0xc] sm:$0xf]
      %v1144 = vld [vmem:[%s5 + $0x10] sm:$0xf]
      %v1145 = vld [vmem:[%s5 + $0x14] sm:$0xf]
      %v1146 = vld [vmem:[%s5 + $0x18] sm:$0xf]
      %v1147 = vld [vmem:[%s5 + $0x1c] sm:$0xf]
      %v1148 = vld [vmem:[%s5 + $0x20] sm:$0xf]
      %v1149 = vld [vmem:[%s5 + $0x24] sm:$0xf]
      %v1150 = vld [vmem:[%s5 + $0x28] sm:$0xf]
      %v1151 = vld [vmem:[%s5 + $0x2c] sm:$0xf]
      %v1152 = vld [vmem:[%s5 + $0x30] sm:$0xf]
      %v1153 = vld [vmem:[%s5 + $0x34] sm:$0xf]
      %v1154 = vld [vmem:[%s5 + $0x38] sm:$0xf]
      %v1155 = vld [vmem:[%s5 + $0x3c] sm:$0xf]
      %v1156 = vld [vmem:[%s6] sm:$0x1]
      %v1158 = vperm.slane %v1156, 0
      %v1176 = vunpack.c.l.b16 %v1140
      %v1177 = vunpack.c.l.b16 %v1141
      %v1178 = vunpack.c.l.b16 %v1142
      %v1179 = vunpack.c.l.b16 %v1143
      %v1180 = vunpack.c.l.b16 %v1144
      %v1181 = vunpack.c.l.b16 %v1145
      %v1182 = vunpack.c.l.b16 %v1146
      %v1183 = vunpack.c.l.b16 %v1147
      %v1184 = vunpack.c.l.b16 %v1148
      %v1185 = vunpack.c.l.b16 %v1149
      %v1186 = vunpack.c.l.b16 %v1150
      %v1187 = vunpack.c.l.b16 %v1151
      %v1188 = vunpack.c.l.b16 %v1152
      %v1189 = vunpack.c.l.b16 %v1153
      %v1190 = vunpack.c.l.b16 %v1154
      %v1191 = vunpack.c.l.b16 %v1155
      %v1192 = vpack.c.b16 %v1177, %v1176
      %v1193 = vpack.c.b16 %v1179, %v1178
      %v1194 = vpack.c.b16 %v1181, %v1180
      %v1195 = vpack.c.b16 %v1183, %v1182
      %v1196 = vpack.c.b16 %v1185, %v1184
      %v1197 = vpack.c.b16 %v1187, %v1186
      %v1198 = vpack.c.b16 %v1189, %v1188
      %v1199 = vpack.c.b16 %v1191, %v1190
      %1208 = vmatpush.bf16.msra.mxu0 %v1199
      %1209 = vmatpush.bf16.msra.mxu0 %v1198
      %1210 = vmatpush.bf16.msra.mxu0 %v1197
      %1211 = vmatpush.bf16.msra.mxu0 %v1196
      %1212 = vmatpush.bf16.msra.mxu0 %v1195
      %1213 = vmatpush.bf16.msra.mxu0 %v1194
      %1214 = vmatpush.bf16.msra.mxu0 %v1193
      %1215 = vmatpush.bf16.msra.mxu0 %v1192
      %1216 = vmatmul.bf16.gmra.mxu0 %v1108
      %v1217 = vpop.f32.mrf.mxu0
      %v1218 = vadd.f32 %v1158, %v1217
      %v1219 = vpop.f32.mrf.mxu0
      %v1220 = vadd.f32 %v1158, %v1219
      %1221 = vmatmul.bf16.gmra.mxu0 %v1109
      %v1222 = vpop.f32.mrf.mxu0
      %v1223 = vadd.f32 %v1158, %v1222
      %v1224 = vpop.f32.mrf.mxu0
      %v1225 = vadd.f32 %v1158, %v1224
      %1226 = vmatmul.bf16.gmra.mxu0 %v1110
      %v1227 = vpop.f32.mrf.mxu0
      %v1228 = vadd.f32 %v1158, %v1227
      %v1229 = vpop.f32.mrf.mxu0
      %v1230 = vadd.f32 %v1158, %v1229
      %1231 = vmatmul.bf16.gmra.mxu0 %v1111
      %v1232 = vpop.f32.mrf.mxu0
      %v1233 = vadd.f32 %v1158, %v1232
      %v1234 = vpop.f32.mrf.mxu0
      %v1235 = vadd.f32 %v1158, %v1234
      %1236 = vmatmul.bf16.gmra.mxu0 %v1112
      %v1237 = vpop.f32.mrf.mxu0
      %v1238 = vadd.f32 %v1158, %v1237
      %v1239 = vpop.f32.mrf.mxu0
      %v1240 = vadd.f32 %v1158, %v1239
      %1241 = vmatmul.bf16.gmra.mxu0 %v1113
      %v1242 = vpop.f32.mrf.mxu0
      %v1243 = vadd.f32 %v1158, %v1242
      %v1244 = vpop.f32.mrf.mxu0
      %v1245 = vadd.f32 %v1158, %v1244
      %1246 = vmatmul.bf16.gmra.mxu0 %v1114
      %v1247 = vpop.f32.mrf.mxu0
      %v1248 = vadd.f32 %v1158, %v1247
      %v1249 = vpop.f32.mrf.mxu0
      %v1250 = vadd.f32 %v1158, %v1249
      %1251 = vmatmul.bf16.gmra.mxu0 %v1115
      %v1252 = vpop.f32.mrf.mxu0
      %v1253 = vadd.f32 %v1158, %v1252
      %v1254 = vpop.f32.mrf.mxu0
      %v1255 = vadd.f32 %v1158, %v1254
      %1256 = vmatmul.bf16.gmra.mxu0 %v1116
      %v1257 = vpop.f32.mrf.mxu0
      %v1258 = vadd.f32 %v1158, %v1257
      %v1259 = vpop.f32.mrf.mxu0
      %v1260 = vadd.f32 %v1158, %v1259
      %1261 = vmatmul.bf16.gmra.mxu0 %v1117
      %v1262 = vpop.f32.mrf.mxu0
      %v1263 = vadd.f32 %v1158, %v1262
      %v1264 = vpop.f32.mrf.mxu0
      %v1265 = vadd.f32 %v1158, %v1264
      %1266 = vmatmul.bf16.gmra.mxu0 %v1118
      %v1267 = vpop.f32.mrf.mxu0
      %v1268 = vadd.f32 %v1158, %v1267
      %v1269 = vpop.f32.mrf.mxu0
      %v1270 = vadd.f32 %v1158, %v1269
      %1271 = vmatmul.bf16.gmra.mxu0 %v1119
      %v1272 = vpop.f32.mrf.mxu0
      %v1273 = vadd.f32 %v1158, %v1272
      %v1274 = vpop.f32.mrf.mxu0
      %v1275 = vadd.f32 %v1158, %v1274
      %1276 = vmatmul.bf16.gmra.mxu0 %v1120
      %v1277 = vpop.f32.mrf.mxu0
      %v1278 = vadd.f32 %v1158, %v1277
      %v1279 = vpop.f32.mrf.mxu0
      %v1280 = vadd.f32 %v1158, %v1279
      %1281 = vmatmul.bf16.gmra.mxu0 %v1121
      %v1282 = vpop.f32.mrf.mxu0
      %v1283 = vadd.f32 %v1158, %v1282
      %v1284 = vpop.f32.mrf.mxu0
      %v1285 = vadd.f32 %v1158, %v1284
      %1286 = vmatmul.bf16.gmra.mxu0 %v1122
      %v1287 = vpop.f32.mrf.mxu0
      %v1288 = vadd.f32 %v1158, %v1287
      %v1289 = vpop.f32.mrf.mxu0
      %v1290 = vadd.f32 %v1158, %v1289
      %1291 = vmatmul.bf16.gmra.mxu0 %v1123
      %v1292 = vpop.f32.mrf.mxu0
      %v1293 = vadd.f32 %v1158, %v1292
      %v1294 = vpop.f32.mrf.mxu0
      %v1295 = vadd.f32 %v1158, %v1294
      %1296 = vmatmul.bf16.gmra.mxu0 %v1124
      %v1297 = vpop.f32.mrf.mxu0
      %v1298 = vadd.f32 %v1158, %v1297
      %v1299 = vpop.f32.mrf.mxu0
      %v1300 = vadd.f32 %v1158, %v1299
      %1301 = vmatmul.bf16.gmra.mxu0 %v1125
      %v1302 = vpop.f32.mrf.mxu0
      %v1303 = vadd.f32 %v1158, %v1302
      %v1304 = vpop.f32.mrf.mxu0
      %v1305 = vadd.f32 %v1158, %v1304
      %1306 = vmatmul.bf16.gmra.mxu0 %v1126
      %v1307 = vpop.f32.mrf.mxu0
      %v1308 = vadd.f32 %v1158, %v1307
      %v1309 = vpop.f32.mrf.mxu0
      %v1310 = vadd.f32 %v1158, %v1309
      %1311 = vmatmul.bf16.gmra.mxu0 %v1127
      %v1312 = vpop.f32.mrf.mxu0
      %v1313 = vadd.f32 %v1158, %v1312
      %v1314 = vpop.f32.mrf.mxu0
      %v1315 = vadd.f32 %v1158, %v1314
      %1316 = vmatmul.bf16.gmra.mxu0 %v1128
      %v1317 = vpop.f32.mrf.mxu0
      %v1318 = vadd.f32 %v1158, %v1317
      %v1319 = vpop.f32.mrf.mxu0
      %v1320 = vadd.f32 %v1158, %v1319
      %1321 = vmatmul.bf16.gmra.mxu0 %v1129
      %v1322 = vpop.f32.mrf.mxu0
      %v1323 = vadd.f32 %v1158, %v1322
      %v1324 = vpop.f32.mrf.mxu0
      %v1325 = vadd.f32 %v1158, %v1324
      %1326 = vmatmul.bf16.gmra.mxu0 %v1130
      %v1327 = vpop.f32.mrf.mxu0
      %v1328 = vadd.f32 %v1158, %v1327
      %v1329 = vpop.f32.mrf.mxu0
      %v1330 = vadd.f32 %v1158, %v1329
      %1331 = vmatmul.bf16.gmra.mxu0 %v1131
      %v1332 = vpop.f32.mrf.mxu0
      %v1333 = vadd.f32 %v1158, %v1332
      %v1334 = vpop.f32.mrf.mxu0
      %v1335 = vadd.f32 %v1158, %v1334
      %1336 = vmatmul.bf16.gmra.mxu0 %v1132
      %v1337 = vpop.f32.mrf.mxu0
      %v1338 = vadd.f32 %v1158, %v1337
      %v1339 = vpop.f32.mrf.mxu0
      %v1340 = vadd.f32 %v1158, %v1339
      %1341 = vmatmul.bf16.gmra.mxu0 %v1133
      %v1342 = vpop.f32.mrf.mxu0
      %v1343 = vadd.f32 %v1158, %v1342
      %v1344 = vpop.f32.mrf.mxu0
      %v1345 = vadd.f32 %v1158, %v1344
      %1346 = vmatmul.bf16.gmra.mxu0 %v1134
      %v1347 = vpop.f32.mrf.mxu0
      %v1348 = vadd.f32 %v1158, %v1347
      %v1349 = vpop.f32.mrf.mxu0
      %v1350 = vadd.f32 %v1158, %v1349
      %1351 = vmatmul.bf16.gmra.mxu0 %v1135
      %v1352 = vpop.f32.mrf.mxu0
      %v1353 = vadd.f32 %v1158, %v1352
      %v1354 = vpop.f32.mrf.mxu0
      %v1355 = vadd.f32 %v1158, %v1354
      %1356 = vmatmul.bf16.gmra.mxu0 %v1136
      %v1357 = vpop.f32.mrf.mxu0
      %v1358 = vadd.f32 %v1158, %v1357
      %v1359 = vpop.f32.mrf.mxu0
      %v1360 = vadd.f32 %v1158, %v1359
      %1361 = vmatmul.bf16.gmra.mxu0 %v1137
      %v1362 = vpop.f32.mrf.mxu0
      %v1363 = vadd.f32 %v1158, %v1362
      %v1364 = vpop.f32.mrf.mxu0
      %v1365 = vadd.f32 %v1158, %v1364
      %1366 = vmatmul.bf16.gmra.mxu0 %v1138
      %v1367 = vpop.f32.mrf.mxu0
      %v1368 = vadd.f32 %v1158, %v1367
      %v1369 = vpop.f32.mrf.mxu0
      %v1370 = vadd.f32 %v1158, %v1369
      %1371 = vmatmul.bf16.gmra.mxu0 %v1139
      %v1372 = vpop.f32.mrf.mxu0
      %v1373 = vadd.f32 %v1158, %v1372
      %v1374 = vpop.f32.mrf.mxu0
      %v1375 = vadd.f32 %v1158, %v1374
      %1376 = vdwg.mxu0
      %1377 = vst [vmem:[%s280] sm:$0xff] %v1218
      %1378 = vst [vmem:[%s280 + $0x8] sm:$0xff] %v1220
      %1379 = vst [vmem:[%s280 + $0x10] sm:$0xff] %v1223
      %1380 = vst [vmem:[%s280 + $0x18] sm:$0xff] %v1225
      %1381 = vst [vmem:[%s280 + $0x20] sm:$0xff] %v1228
      %1382 = vst [vmem:[%s280 + $0x28] sm:$0xff] %v1230
      %1383 = vst [vmem:[%s280 + $0x30] sm:$0xff] %v1233
      %1384 = vst [vmem:[%s280 + $0x38] sm:$0xff] %v1235
      %1385 = vst [vmem:[%s280 + $0x40] sm:$0xff] %v1238
      %1386 = vst [vmem:[%s280 + $0x48] sm:$0xff] %v1240
      %1387 = vst [vmem:[%s280 + $0x50] sm:$0xff] %v1243
      %1388 = vst [vmem:[%s280 + $0x58] sm:$0xff] %v1245
      %1389 = vst [vmem:[%s280 + $0x60] sm:$0xff] %v1248
      %1390 = vst [vmem:[%s280 + $0x68] sm:$0xff] %v1250
      %1391 = vst [vmem:[%s280 + $0x70] sm:$0xff] %v1253
      %1392 = vst [vmem:[%s280 + $0x78] sm:$0xff] %v1255
      %1393 = vst [vmem:[%s280 + $0x80] sm:$0xff] %v1258
      %1394 = vst [vmem:[%s280 + $0x88] sm:$0xff] %v1260
      %1395 = vst [vmem:[%s280 + $0x90] sm:$0xff] %v1263
      %1396 = vst [vmem:[%s280 + $0x98] sm:$0xff] %v1265
      %1397 = vst [vmem:[%s280 + $0xa0] sm:$0xff] %v1268
      %1398 = vst [vmem:[%s280 + $0xa8] sm:$0xff] %v1270
      %1399 = vst [vmem:[%s280 + $0xb0] sm:$0xff] %v1273
      %1400 = vst [vmem:[%s280 + $0xb8] sm:$0xff] %v1275
      %1401 = vst [vmem:[%s280 + $0xc0] sm:$0xff] %v1278
      %1402 = vst [vmem:[%s280 + $0xc8] sm:$0xff] %v1280
      %1403 = vst [vmem:[%s280 + $0xd0] sm:$0xff] %v1283
      %1404 = vst [vmem:[%s280 + $0xd8] sm:$0xff] %v1285
      %1405 = vst [vmem:[%s280 + $0xe0] sm:$0xff] %v1288
      %1406 = vst [vmem:[%s280 + $0xe8] sm:$0xff] %v1290
      %1407 = vst [vmem:[%s280 + $0xf0] sm:$0xff] %v1293
      %1408 = vst [vmem:[%s280 + $0xf8] sm:$0xff] %v1295
      %1409 = vst [vmem:[%s280 + $0x100] sm:$0xff] %v1298
      %1410 = vst [vmem:[%s280 + $0x108] sm:$0xff] %v1300
      %1411 = vst [vmem:[%s280 + $0x110] sm:$0xff] %v1303
      %1412 = vst [vmem:[%s280 + $0x118] sm:$0xff] %v1305
      %1413 = vst [vmem:[%s280 + $0x120] sm:$0xff] %v1308
      %1414 = vst [vmem:[%s280 + $0x128] sm:$0xff] %v1310
      %1415 = vst [vmem:[%s280 + $0x130] sm:$0xff] %v1313
      %1416 = vst [vmem:[%s280 + $0x138] sm:$0xff] %v1315
      %1417 = vst [vmem:[%s280 + $0x140] sm:$0xff] %v1318
      %1418 = vst [vmem:[%s280 + $0x148] sm:$0xff] %v1320
      %1419 = vst [vmem:[%s280 + $0x150] sm:$0xff] %v1323
      %1420 = vst [vmem:[%s280 + $0x158] sm:$0xff] %v1325
      %1421 = vst [vmem:[%s280 + $0x160] sm:$0xff] %v1328
      %1422 = vst [vmem:[%s280 + $0x168] sm:$0xff] %v1330
      %1423 = vst [vmem:[%s280 + $0x170] sm:$0xff] %v1333
      %1424 = vst [vmem:[%s280 + $0x178] sm:$0xff] %v1335
      %1425 = vst [vmem:[%s280 + $0x180] sm:$0xff] %v1338
      %1426 = vst [vmem:[%s280 + $0x188] sm:$0xff] %v1340
      %1427 = vst [vmem:[%s280 + $0x190] sm:$0xff] %v1343
      %1428 = vst [vmem:[%s280 + $0x198] sm:$0xff] %v1345
      %1429 = vst [vmem:[%s280 + $0x1a0] sm:$0xff] %v1348
      %1430 = vst [vmem:[%s280 + $0x1a8] sm:$0xff] %v1350
      %1431 = vst [vmem:[%s280 + $0x1b0] sm:$0xff] %v1353
      %1432 = vst [vmem:[%s280 + $0x1b8] sm:$0xff] %v1355
      %1433 = vst [vmem:[%s280 + $0x1c0] sm:$0xff] %v1358
      %1434 = vst [vmem:[%s280 + $0x1c8] sm:$0xff] %v1360
      %1435 = vst [vmem:[%s280 + $0x1d0] sm:$0xff] %v1363
      %1436 = vst [vmem:[%s280 + $0x1d8] sm:$0xff] %v1365
      %1437 = vst [vmem:[%s280 + $0x1e0] sm:$0xff] %v1368
      %1438 = vst [vmem:[%s280 + $0x1e8] sm:$0xff] %v1370
      %1439 = vst [vmem:[%s280 + $0x1f0] sm:$0xff] %v1373
      %1440 = vst [vmem:[%s280 + $0x1f8] sm:$0xff] %v1375
      %s1441 = smul.u32 64, %s18
      %p1442 = scmp.lt.s32.totalorder %s1441, 127
      %s1443 = scalar_select %p1442, %s1441, 127
      %s1444 = smul.addr %s1443, 8
      %s1445 = scalar_lea.vmem %s7, %s1444
      // Predicated region
      $region49: #{torchnn_forward.1} parent=47 // pred_check
        %p1446 = pneg %p188
      $region50: #{torchnn_forward.1} parent=47 // pred_check_branch
        %1448 = sbr.rel (%p1446) target = $region52
      $region51: #{torchnn_forward.1} parent=47 // pred_region
        %s1449 = smul.u32 64, %s18
      $region52: #{torchnn_forward.1} parent=47 // pred_fallthru
        _
    $region48: #{torchnn_forward.1} parent=5 // pred_fallthru
      _
    %p1450 = scmp.le.s32.totalorder 2, %s13
    // Predicated region
    $region53: #{torchnn_forward.1} parent=5 // pred_check
      %p1451 = pneg %p1450
    $region54: #{torchnn_forward.1} parent=5 // pred_check_branch
      %1453 = sbr.rel (%p1451) target = $region56
    $region55: #{torchnn_forward.1} parent=5 // pred_region
      %s1454 = ssub.s32 %s13, 2
      // Predicated region
      $region57: #{torchnn_forward.1} parent=55 // pred_check
        %p1455 = pneg %p194
      $region58: #{torchnn_forward.1} parent=55 // pred_check_branch
        %1457 = sbr.rel (%p1455) target = $region60
      $region59: #{torchnn_forward.1} parent=55 // pred_region
        %s1458 = smul.u32 64, %s19
        %p1459 = scmp.lt.s32.totalorder %s1458, 127
        %s1460 = scalar_select %p1459, %s1458, 127
        %s1461 = smul.addr %s1460, 8
        %s1462 = scalar_lea.vmem %s7, %s1461
      $region60: #{torchnn_forward.1} parent=55 // pred_fallthru
        _
    $region56: #{torchnn_forward.1} parent=5 // pred_fallthru
      _
  $region6: #{torchnn_forward.1} parent=0 // loop_footer
    %s17 = sadd.s32 1, %s13
  $region7: #{torchnn_forward.1} parent=0 // loop_footer_branch
    %12 = sbr.rel target = $region3
  $region8: #{torchnn_forward.1} parent=0 // loop_exit
    _

</llo_original>
